<compile_context>
chip_gen: v5e
topology: v5e:2x2
jax: 0.10.0
libtpu: 0.0.40
codegen_flags: <defaults>
</compile_context>

<pallas_src>
import math

import jax
import jax.numpy as jnp
from jax import lax
from jax.experimental import pallas as pl
from jax.experimental.pallas import tpu as pltpu


def head_kernel(xq_ref, xkv_ref, wq_ref, bq_ref, wkv_ref, bkv_ref,
                o_ref, m_sc, l_sc, acc_sc):
    """Flash-style single-head causal attention.

    Grid: (batch, q_tile, kv_tile); kv_tile is the reduction axis (last, "arbitrary").

      xq_ref  : (1, tq, C)   x rows for this query tile
      xkv_ref : (1, tk, C)   x rows for this key/value tile
      wq_ref  : (C, H)       bq_ref  : (1, H)
      wkv_ref : (C, 2H)      bkv_ref : (1, 2H)     ([Wk | Wv] fused)
      o_ref   : (1, tq, H)
      m_sc / l_sc : (tq, 1) f32 scratch;  acc_sc : (tq, H) f32 scratch
    """
    q_idx = pl.program_id(1)
    kv_idx = pl.program_id(2)

    H = o_ref.shape[-1]
    scale = H ** (-0.5)

    @pl.when(kv_idx == 0)
    def _init():
        m_sc[...] = jnp.full(m_sc.shape, -jnp.inf, jnp.float32)
        l_sc[...] = jnp.zeros(l_sc.shape, jnp.float32)
        acc_sc[...] = jnp.zeros(acc_sc.shape, jnp.float32)

    def _attend(masked):
        # bf16 MXU operands, f32 accumulation.
        xq = xq_ref[0].astype(jnp.bfloat16)        # (tq, C)
        xkv = xkv_ref[0].astype(jnp.bfloat16)      # (tk, C)
        wq = wq_ref[...].astype(jnp.bfloat16)      # (C, H)
        wkv = wkv_ref[...].astype(jnp.bfloat16)    # (C, 2H)

        # Projections (nn.Linear: x @ W^T + b; weights passed pre-transposed).
        q = jnp.dot(xq, wq, preferred_element_type=jnp.float32) + bq_ref[...]     # (tq, H)
        kv = jnp.dot(xkv, wkv, preferred_element_type=jnp.float32) + bkv_ref[...]  # (tk, 2H)
        k = kv[:, :H]
        v = kv[:, H:]

        # Scale the (tq, H) q tile once instead of the (tq, tk) score tile.
        qs = (q * scale).astype(jnp.bfloat16)
        kb = k.astype(jnp.bfloat16)

        # Scores s[i, j] = sum_h q[i, h] * k[j, h]  (no explicit k.T materialization).
        s = lax.dot_general(qs, kb, (((1,), (1,)), ((), ())),
                            preferred_element_type=jnp.float32)                   # (tq, tk)

        if masked:
            # Diagonal tile only (tq == tk, aligned tiles): local causal mask.
            row = lax.broadcasted_iota(jnp.int32, s.shape, 0)
            col = lax.broadcasted_iota(jnp.int32, s.shape, 1)
            s = jnp.where(col <= row, s, -jnp.inf)

        # Online (streaming) softmax update.
        m_prev = m_sc[...]
        m_new = jnp.maximum(m_prev, s.max(axis=-1, keepdims=True))
        alpha = jnp.exp(m_prev - m_new)
        p = jnp.exp(s - m_new)
        l_sc[...] = alpha * l_sc[...] + p.sum(axis=-1, keepdims=True)
        acc_sc[...] = alpha * acc_sc[...] + jnp.dot(
            p.astype(jnp.bfloat16), v.astype(jnp.bfloat16),
            preferred_element_type=jnp.float32)
        m_sc[...] = m_new

    # Causal tile skipping: kv tiles strictly above the diagonal do nothing.
    @pl.when(kv_idx < q_idx)
    def _below_diag():
        _attend(masked=False)

    @pl.when(kv_idx == q_idx)
    def _diag_and_finalize():
        _attend(masked=True)
        # Diagonal tile is the last relevant kv tile for this query tile: finalize.
        # Dropout: identity (eval mode).
        inv_l = pl.reciprocal(l_sc[...], approx=True)
        o_ref[0] = (acc_sc[...] * inv_l).astype(o_ref.dtype)


def _pick_tile(T, max_tile=256):
    """Largest tile <= max_tile that divides T (multiple of 8), else full T."""
    if T <= max_tile:
        return T
    for t in range(max_tile, 0, -8):
        if t % 8 == 0 and T % t == 0:
            return t
    return T


def head_forward(x, wk, bk, wq, bq, wv, bv, *, max_tile=256):
    """x: (B, T, C) float32. Weights (C, H) pre-transposed; biases (1, H)."""
    B, T, C = x.shape
    H = wq.shape[1]
    tile = _pick_tile(T, max_tile)
    n_t = T // tile

    # Fuse K and V projections into one (C, 2H) matmul.
    wkv = jnp.concatenate([wk, wv], axis=1)    # (C, 2H)
    bkv = jnp.concatenate([bk, bv], axis=1)    # (1, 2H)

    x_q_spec = pl.BlockSpec((1, tile, C), lambda b, qi, ki: (b, qi, 0))
    x_kv_spec = pl.BlockSpec((1, tile, C), lambda b, qi, ki: (b, ki, 0))
    wq_spec = pl.BlockSpec((C, H), lambda b, qi, ki: (0, 0))
    bq_spec = pl.BlockSpec((1, H), lambda b, qi, ki: (0, 0))
    wkv_spec = pl.BlockSpec((C, 2 * H), lambda b, qi, ki: (0, 0))
    bkv_spec = pl.BlockSpec((1, 2 * H), lambda b, qi, ki: (0, 0))
    o_spec = pl.BlockSpec((1, tile, H), lambda b, qi, ki: (b, qi, 0))

    return pl.pallas_call(
        head_kernel,
        out_shape=jax.ShapeDtypeStruct((B, T, H), jnp.float32),
        grid_spec=pltpu.PrefetchScalarGridSpec(
            num_scalar_prefetch=0,
            grid=(B, n_t, n_t),
            in_specs=[x_q_spec, x_kv_spec, wq_spec, bq_spec, wkv_spec, bkv_spec],
            out_specs=o_spec,
            scratch_shapes=[
                pltpu.VMEM((tile, 1), jnp.float32),   # running max m
                pltpu.VMEM((tile, 1), jnp.float32),   # running sum l
                pltpu.VMEM((tile, H), jnp.float32),   # output accumulator
            ],
        ),
        compiler_params=pltpu.CompilerParams(
            dimension_semantics=("parallel", "parallel", "arbitrary"),
        ),
    )(x, x, wq, bq, wkv, bkv)


def reference_forward(x, wk, bk, wq, bq, wv, bv):
    """Plain-JAX f32 reference matching the PyTorch forward exactly (eval mode)."""
    k = x @ wk + bk
    q = x @ wq + bq
    v = x @ wv + bv
    wei = jnp.einsum("bth,bsh->bts", q, k) * (k.shape[-1] ** -0.5)
    T = x.shape[1]
    mask = jnp.tril(jnp.ones((T, T), dtype=bool))
    wei = jnp.where(mask[None, :, :], wei, -jnp.inf)
    wei = jax.nn.softmax(wei, axis=-1)
    return wei @ v


if __name__ == "__main__":
    # Small shapes consistent with the module: block_size >= T.
    B, T, C, H = 2, 8, 32, 16           # batch, seq, n_embd, head_size

    key = jax.random.PRNGKey(0)
    kx, k1, k2, k3, k4, k5, k6 = jax.random.split(key, 7)

    x = jax.random.normal(kx, (B, T, C), dtype=jnp.float32)

    # Deterministic parameter init (nn.Linear-style uniform bound 1/sqrt(C)).
    bound = 1.0 / math.sqrt(C)
    wk = jax.random.uniform(k1, (C, H), jnp.float32, -bound, bound)
    bk = jax.random.uniform(k2, (1, H), jnp.float32, -bound, bound)
    wq = jax.random.uniform(k3, (C, H), jnp.float32, -bound, bound)
    bq = jax.random.uniform(k4, (1, H), jnp.float32, -bound, bound)
    wv = jax.random.uniform(k5, (C, H), jnp.float32, -bound, bound)
    bv = jax.random.uniform(k6, (1, H), jnp.float32, -bound, bound)

    out = head_forward(x, wk, bk, wq, bq, wv, bv)
    out = jax.block_until_ready(out)

    ref = reference_forward(x, wk, bk, wq, bq, wv, bv)
    assert out.shape == (B, T, H)
    # Tolerance widened vs the f32 reference because MXU operands are cast to bf16
    # (f32 accumulation preserved), per perf-review guidance.
    assert jnp.allclose(out, ref, atol=2e-2, rtol=2e-2), "mismatch vs reference"

    print("KERNEL_OK")
</pallas_src>

<mosaic_0001>
module attributes {stable_mosaic.version = 11 : i64} {
  func.func @head_kernel(%arg0: i32, %arg1: i32, %arg2: i32, %arg3: memref<1x8x32xf32, #tpu.memory_space<vmem>>, %arg4: memref<1x8x32xf32, #tpu.memory_space<vmem>>, %arg5: memref<32x16xf32, #tpu.memory_space<vmem>>, %arg6: memref<1x16xf32, #tpu.memory_space<vmem>>, %arg7: memref<32x32xf32, #tpu.memory_space<vmem>>, %arg8: memref<1x32xf32, #tpu.memory_space<vmem>>, %arg9: memref<1x8x16xf32, #tpu.memory_space<vmem>>, %arg10: memref<8x1xf32, #tpu.memory_space<vmem>>, %arg11: memref<8x1xf32, #tpu.memory_space<vmem>>, %arg12: memref<8x16xf32, #tpu.memory_space<vmem>>) attributes {dimension_semantics = [#tpu.dimension_semantics<parallel>, #tpu.dimension_semantics<parallel>, #tpu.dimension_semantics<arbitrary>], iteration_bounds = array<i64: 2, 1, 1>, scalar_prefetch = 0 : i64, scratch_operands = 3 : i64, tpu.core_type = #tpu.core_type<tc>, window_params = [{transform_indices = @transform_0, window_bounds = array<i64: 1, 8, 32>}, {transform_indices = @transform_1, window_bounds = array<i64: 1, 8, 32>}, {pipeline_mode = #tpu.pipeline_mode<synchronous>, transform_indices = @transform_2, window_bounds = array<i64: 32, 16>}, {pipeline_mode = #tpu.pipeline_mode<synchronous>, transform_indices = @transform_3, window_bounds = array<i64: 1, 16>}, {pipeline_mode = #tpu.pipeline_mode<synchronous>, transform_indices = @transform_4, window_bounds = array<i64: 32, 32>}, {pipeline_mode = #tpu.pipeline_mode<synchronous>, transform_indices = @transform_5, window_bounds = array<i64: 1, 32>}, {transform_indices = @transform_6, window_bounds = array<i64: 1, 8, 16>}]} {
    %c0_i32 = arith.constant 0 : i32
    %0 = arith.cmpi eq, %arg2, %c0_i32 : i32
    %1 = arith.extui %0 : i1 to i32
    %c0_i32_0 = arith.constant 0 : i32
    %2 = arith.cmpi ne, %1, %c0_i32_0 : i32
    scf.if %2 {
      %cst = arith.constant 0xFF800000 : f32
      %9 = vector.broadcast %cst : f32 to vector<8x1xf32>
      %c0 = arith.constant 0 : index
      %c0_3 = arith.constant 0 : index
      %10 = vector.load %arg10[%c0, %c0_3] : memref<8x1xf32, #tpu.memory_space<vmem>>, vector<8x1xf32>
      tpu.vector_store %arg10[%c0, %c0_3], %9 {strides = array<i32>} : memref<8x1xf32, #tpu.memory_space<vmem>>, vector<8x1xf32>,
      %cst_4 = arith.constant 0.000000e+00 : f32
      %11 = vector.broadcast %cst_4 : f32 to vector<8x1xf32>
      %c0_5 = arith.constant 0 : index
      %c0_6 = arith.constant 0 : index
      %12 = vector.load %arg11[%c0_5, %c0_6] : memref<8x1xf32, #tpu.memory_space<vmem>>, vector<8x1xf32>
      tpu.vector_store %arg11[%c0_5, %c0_6], %11 {strides = array<i32>} : memref<8x1xf32, #tpu.memory_space<vmem>>, vector<8x1xf32>,
      %cst_7 = arith.constant 0.000000e+00 : f32
      %13 = vector.broadcast %cst_7 : f32 to vector<8x16xf32>
      %c0_8 = arith.constant 0 : index
      %c0_9 = arith.constant 0 : index
      %14 = vector.load %arg12[%c0_8, %c0_9] : memref<8x16xf32, #tpu.memory_space<vmem>>, vector<8x16xf32>
      tpu.vector_store %arg12[%c0_8, %c0_9], %13 {strides = array<i32>} : memref<8x16xf32, #tpu.memory_space<vmem>>, vector<8x16xf32>,
    } else {
    }
    %3 = arith.cmpi slt, %arg2, %arg1 : i32
    %4 = arith.extui %3 : i1 to i32
    %c0_i32_1 = arith.constant 0 : i32
    %5 = arith.cmpi ne, %4, %c0_i32_1 : i32
    scf.if %5 {
      %c0 = arith.constant 0 : index
      %c0_3 = arith.constant 0 : index
      %c0_4 = arith.constant 0 : index
      %9 = vector.load %arg3[%c0, %c0_3, %c0_4] : memref<1x8x32xf32, #tpu.memory_space<vmem>>, vector<1x8x32xf32>
      %10 = vector.shape_cast %9 : vector<1x8x32xf32> to vector<8x32xf32>
      %11 = arith.truncf %10 : vector<8x32xf32> to vector<8x32xbf16>
      %c0_5 = arith.constant 0 : index
      %c0_6 = arith.constant 0 : index
      %c0_7 = arith.constant 0 : index
      %12 = vector.load %arg4[%c0_5, %c0_6, %c0_7] : memref<1x8x32xf32, #tpu.memory_space<vmem>>, vector<1x8x32xf32>
      %13 = vector.shape_cast %12 : vector<1x8x32xf32> to vector<8x32xf32>
      %14 = arith.truncf %13 : vector<8x32xf32> to vector<8x32xbf16>
      %c0_8 = arith.constant 0 : index
      %c0_9 = arith.constant 0 : index
      %15 = vector.load %arg5[%c0_8, %c0_9] : memref<32x16xf32, #tpu.memory_space<vmem>>, vector<32x16xf32>
      %16 = arith.truncf %15 : vector<32x16xf32> to vector<32x16xbf16>
      %c0_10 = arith.constant 0 : index
      %c0_11 = arith.constant 0 : index
      %17 = vector.load %arg7[%c0_10, %c0_11] : memref<32x32xf32, #tpu.memory_space<vmem>>, vector<32x32xf32>
      %18 = arith.truncf %17 : vector<32x32xf32> to vector<32x32xbf16>
      %cst = arith.constant dense<0.000000e+00> : vector<8x16xf32>
      %19 = tpu.matmul %11, %16, %cst {dimension_numbers = #tpu.dot_dimension_numbers<[1], [0], [0], [1], [0, 0, 1, 1], [], []>} : vector<8x32xbf16>, vector<32x16xbf16>, vector<8x16xf32> -> vector<8x16xf32>
      %c0_12 = arith.constant 0 : index
      %c0_13 = arith.constant 0 : index
      %20 = vector.load %arg6[%c0_12, %c0_13] : memref<1x16xf32, #tpu.memory_space<vmem>>, vector<1x16xf32>
      %21 = vector.broadcast %20 : vector<1x16xf32> to vector<8x16xf32>
      %22 = arith.addf %19, %21 : vector<8x16xf32>
      %cst_14 = arith.constant dense<0.000000e+00> : vector<8x32xf32>
      %23 = tpu.matmul %14, %18, %cst_14 {dimension_numbers = #tpu.dot_dimension_numbers<[1], [0], [0], [1], [0, 0, 1, 1], [], []>} : vector<8x32xbf16>, vector<32x32xbf16>, vector<8x32xf32> -> vector<8x32xf32>
      %c0_15 = arith.constant 0 : index
      %c0_16 = arith.constant 0 : index
      %24 = vector.load %arg8[%c0_15, %c0_16] : memref<1x32xf32, #tpu.memory_space<vmem>>, vector<1x32xf32>
      %25 = vector.broadcast %24 : vector<1x32xf32> to vector<8x32xf32>
      %26 = arith.addf %23, %25 : vector<8x32xf32>
      %27 = vector.extract_strided_slice %26 {offsets = [0, 0], sizes = [8, 16], strides = [1, 1]} : vector<8x32xf32> to vector<8x16xf32>
      %28 = vector.extract_strided_slice %26 {offsets = [0, 16], sizes = [8, 16], strides = [1, 1]} : vector<8x32xf32> to vector<8x16xf32>
      %cst_17 = arith.constant 2.500000e-01 : f32
      %29 = vector.broadcast %cst_17 : f32 to vector<8x16xf32>
      %30 = arith.mulf %22, %29 : vector<8x16xf32>
      %31 = arith.truncf %30 : vector<8x16xf32> to vector<8x16xbf16>
      %32 = arith.truncf %27 : vector<8x16xf32> to vector<8x16xbf16>
      %cst_18 = arith.constant dense<0.000000e+00> : vector<8x8xf32>
      %33 = tpu.matmul %31, %32, %cst_18 {dimension_numbers = #tpu.dot_dimension_numbers<[1], [1], [0], [0], [0, 0, 1, 0], [], []>} : vector<8x16xbf16>, vector<8x16xbf16>, vector<8x8xf32> -> vector<8x8xf32>
      %c0_19 = arith.constant 0 : index
      %c0_20 = arith.constant 0 : index
      %34 = vector.load %arg10[%c0_19, %c0_20] : memref<8x1xf32, #tpu.memory_space<vmem>>, vector<8x1xf32>
      %cst_21 = arith.constant dense<0xFF800000> : vector<8xf32>
      %35 = vector.multi_reduction <maximumf>, %33, %cst_21 [1] : vector<8x8xf32> to vector<8xf32>
      %36 = vector.shape_cast %35 : vector<8xf32> to vector<8x1xf32>
      %37 = arith.maximumf %34, %36 : vector<8x1xf32>
      %38 = arith.subf %34, %37 : vector<8x1xf32>
      %39 = math.exp %38 : vector<8x1xf32>
      %40 = vector.broadcast %37 : vector<8x1xf32> to vector<8x8xf32>
      %41 = arith.subf %33, %40 : vector<8x8xf32>
      %42 = math.exp %41 : vector<8x8xf32>
      %c0_22 = arith.constant 0 : index
      %c0_23 = arith.constant 0 : index
      %43 = vector.load %arg11[%c0_22, %c0_23] : memref<8x1xf32, #tpu.memory_space<vmem>>, vector<8x1xf32>
      %44 = arith.mulf %39, %43 : vector<8x1xf32>
      %cst_24 = arith.constant dense<0.000000e+00> : vector<8xf32>
      %45 = vector.multi_reduction <add>, %42, %cst_24 [1] : vector<8x8xf32> to vector<8xf32>
      %46 = vector.shape_cast %45 : vector<8xf32> to vector<8x1xf32>
      %47 = arith.addf %44, %46 : vector<8x1xf32>
      %c0_25 = arith.constant 0 : index
      %c0_26 = arith.constant 0 : index
      %48 = vector.load %arg11[%c0_25, %c0_26] : memref<8x1xf32, #tpu.memory_space<vmem>>, vector<8x1xf32>
      tpu.vector_store %arg11[%c0_25, %c0_26], %47 {strides = array<i32>} : memref<8x1xf32, #tpu.memory_space<vmem>>, vector<8x1xf32>,
      %c0_27 = arith.constant 0 : index
      %c0_28 = arith.constant 0 : index
      %49 = vector.load %arg12[%c0_27, %c0_28] : memref<8x16xf32, #tpu.memory_space<vmem>>, vector<8x16xf32>
      %50 = vector.broadcast %39 : vector<8x1xf32> to vector<8x16xf32>
      %51 = arith.mulf %50, %49 : vector<8x16xf32>
      %52 = arith.truncf %42 : vector<8x8xf32> to vector<8x8xbf16>
      %53 = arith.truncf %28 : vector<8x16xf32> to vector<8x16xbf16>
      %cst_29 = arith.constant dense<0.000000e+00> : vector<8x16xf32>
      %54 = tpu.matmul %52, %53, %cst_29 {dimension_numbers = #tpu.dot_dimension_numbers<[1], [0], [0], [1], [0, 0, 1, 1], [], []>} : vector<8x8xbf16>, vector<8x16xbf16>, vector<8x16xf32> -> vector<8x16xf32>
      %55 = arith.addf %51, %54 : vector<8x16xf32>
      %c0_30 = arith.constant 0 : index
      %c0_31 = arith.constant 0 : index
      %56 = vector.load %arg12[%c0_30, %c0_31] : memref<8x16xf32, #tpu.memory_space<vmem>>, vector<8x16xf32>
      tpu.vector_store %arg12[%c0_30, %c0_31], %55 {strides = array<i32>} : memref<8x16xf32, #tpu.memory_space<vmem>>, vector<8x16xf32>,
      %c0_32 = arith.constant 0 : index
      %c0_33 = arith.constant 0 : index
      %57 = vector.load %arg10[%c0_32, %c0_33] : memref<8x1xf32, #tpu.memory_space<vmem>>, vector<8x1xf32>
      tpu.vector_store %arg10[%c0_32, %c0_33], %37 {strides = array<i32>} : memref<8x1xf32, #tpu.memory_space<vmem>>, vector<8x1xf32>,
    } else {
    }
    %6 = arith.cmpi eq, %arg2, %arg1 : i32
    %7 = arith.extui %6 : i1 to i32
    %c0_i32_2 = arith.constant 0 : i32
    %8 = arith.cmpi ne, %7, %c0_i32_2 : i32
    scf.if %8 {
      %c0 = arith.constant 0 : index
      %c0_3 = arith.constant 0 : index
      %c0_4 = arith.constant 0 : index
      %9 = vector.load %arg3[%c0, %c0_3, %c0_4] : memref<1x8x32xf32, #tpu.memory_space<vmem>>, vector<1x8x32xf32>
      %10 = vector.shape_cast %9 : vector<1x8x32xf32> to vector<8x32xf32>
      %11 = arith.truncf %10 : vector<8x32xf32> to vector<8x32xbf16>
      %c0_5 = arith.constant 0 : index
      %c0_6 = arith.constant 0 : index
      %c0_7 = arith.constant 0 : index
      %12 = vector.load %arg4[%c0_5, %c0_6, %c0_7] : memref<1x8x32xf32, #tpu.memory_space<vmem>>, vector<1x8x32xf32>
      %13 = vector.shape_cast %12 : vector<1x8x32xf32> to vector<8x32xf32>
      %14 = arith.truncf %13 : vector<8x32xf32> to vector<8x32xbf16>
      %c0_8 = arith.constant 0 : index
      %c0_9 = arith.constant 0 : index
      %15 = vector.load %arg5[%c0_8, %c0_9] : memref<32x16xf32, #tpu.memory_space<vmem>>, vector<32x16xf32>
      %16 = arith.truncf %15 : vector<32x16xf32> to vector<32x16xbf16>
      %c0_10 = arith.constant 0 : index
      %c0_11 = arith.constant 0 : index
      %17 = vector.load %arg7[%c0_10, %c0_11] : memref<32x32xf32, #tpu.memory_space<vmem>>, vector<32x32xf32>
      %18 = arith.truncf %17 : vector<32x32xf32> to vector<32x32xbf16>
      %cst = arith.constant dense<0.000000e+00> : vector<8x16xf32>
      %19 = tpu.matmul %11, %16, %cst {dimension_numbers = #tpu.dot_dimension_numbers<[1], [0], [0], [1], [0, 0, 1, 1], [], []>} : vector<8x32xbf16>, vector<32x16xbf16>, vector<8x16xf32> -> vector<8x16xf32>
      %c0_12 = arith.constant 0 : index
      %c0_13 = arith.constant 0 : index
      %20 = vector.load %arg6[%c0_12, %c0_13] : memref<1x16xf32, #tpu.memory_space<vmem>>, vector<1x16xf32>
      %21 = vector.broadcast %20 : vector<1x16xf32> to vector<8x16xf32>
      %22 = arith.addf %19, %21 : vector<8x16xf32>
      %cst_14 = arith.constant dense<0.000000e+00> : vector<8x32xf32>
      %23 = tpu.matmul %14, %18, %cst_14 {dimension_numbers = #tpu.dot_dimension_numbers<[1], [0], [0], [1], [0, 0, 1, 1], [], []>} : vector<8x32xbf16>, vector<32x32xbf16>, vector<8x32xf32> -> vector<8x32xf32>
      %c0_15 = arith.constant 0 : index
      %c0_16 = arith.constant 0 : index
      %24 = vector.load %arg8[%c0_15, %c0_16] : memref<1x32xf32, #tpu.memory_space<vmem>>, vector<1x32xf32>
      %25 = vector.broadcast %24 : vector<1x32xf32> to vector<8x32xf32>
      %26 = arith.addf %23, %25 : vector<8x32xf32>
      %27 = vector.extract_strided_slice %26 {offsets = [0, 0], sizes = [8, 16], strides = [1, 1]} : vector<8x32xf32> to vector<8x16xf32>
      %28 = vector.extract_strided_slice %26 {offsets = [0, 16], sizes = [8, 16], strides = [1, 1]} : vector<8x32xf32> to vector<8x16xf32>
      %cst_17 = arith.constant 2.500000e-01 : f32
      %29 = vector.broadcast %cst_17 : f32 to vector<8x16xf32>
      %30 = arith.mulf %22, %29 : vector<8x16xf32>
      %31 = arith.truncf %30 : vector<8x16xf32> to vector<8x16xbf16>
      %32 = arith.truncf %27 : vector<8x16xf32> to vector<8x16xbf16>
      %cst_18 = arith.constant dense<0.000000e+00> : vector<8x8xf32>
      %33 = tpu.matmul %31, %32, %cst_18 {dimension_numbers = #tpu.dot_dimension_numbers<[1], [1], [0], [0], [0, 0, 1, 0], [], []>} : vector<8x16xbf16>, vector<8x16xbf16>, vector<8x8xf32> -> vector<8x8xf32>
      %34 = tpu.iota {dimensions = array<i32: 0>} : vector<8x8xi32>
      %35 = tpu.iota {dimensions = array<i32: 1>} : vector<8x8xi32>
      %36 = arith.cmpi sle, %35, %34 : vector<8x8xi32>
      %cst_19 = arith.constant 0xFF800000 : f32
      %37 = vector.broadcast %cst_19 : f32 to vector<8x8xf32>
      %38 = arith.select %36, %33, %37 : vector<8x8xi1>, vector<8x8xf32>
      %c0_20 = arith.constant 0 : index
      %c0_21 = arith.constant 0 : index
      %39 = vector.load %arg10[%c0_20, %c0_21] : memref<8x1xf32, #tpu.memory_space<vmem>>, vector<8x1xf32>
      %cst_22 = arith.constant dense<0xFF800000> : vector<8xf32>
      %40 = vector.multi_reduction <maximumf>, %38, %cst_22 [1] : vector<8x8xf32> to vector<8xf32>
      %41 = vector.shape_cast %40 : vector<8xf32> to vector<8x1xf32>
      %42 = arith.maximumf %39, %41 : vector<8x1xf32>
      %43 = arith.subf %39, %42 : vector<8x1xf32>
      %44 = math.exp %43 : vector<8x1xf32>
      %45 = vector.broadcast %42 : vector<8x1xf32> to vector<8x8xf32>
      %46 = arith.subf %38, %45 : vector<8x8xf32>
      %47 = math.exp %46 : vector<8x8xf32>
      %c0_23 = arith.constant 0 : index
      %c0_24 = arith.constant 0 : index
      %48 = vector.load %arg11[%c0_23, %c0_24] : memref<8x1xf32, #tpu.memory_space<vmem>>, vector<8x1xf32>
      %49 = arith.mulf %44, %48 : vector<8x1xf32>
      %cst_25 = arith.constant dense<0.000000e+00> : vector<8xf32>
      %50 = vector.multi_reduction <add>, %47, %cst_25 [1] : vector<8x8xf32> to vector<8xf32>
      %51 = vector.shape_cast %50 : vector<8xf32> to vector<8x1xf32>
      %52 = arith.addf %49, %51 : vector<8x1xf32>
      %c0_26 = arith.constant 0 : index
      %c0_27 = arith.constant 0 : index
      %53 = vector.load %arg11[%c0_26, %c0_27] : memref<8x1xf32, #tpu.memory_space<vmem>>, vector<8x1xf32>
      tpu.vector_store %arg11[%c0_26, %c0_27], %52 {strides = array<i32>} : memref<8x1xf32, #tpu.memory_space<vmem>>, vector<8x1xf32>,
      %c0_28 = arith.constant 0 : index
      %c0_29 = arith.constant 0 : index
      %54 = vector.load %arg12[%c0_28, %c0_29] : memref<8x16xf32, #tpu.memory_space<vmem>>, vector<8x16xf32>
      %55 = vector.broadcast %44 : vector<8x1xf32> to vector<8x16xf32>
      %56 = arith.mulf %55, %54 : vector<8x16xf32>
      %57 = arith.truncf %47 : vector<8x8xf32> to vector<8x8xbf16>
      %58 = arith.truncf %28 : vector<8x16xf32> to vector<8x16xbf16>
      %cst_30 = arith.constant dense<0.000000e+00> : vector<8x16xf32>
      %59 = tpu.matmul %57, %58, %cst_30 {dimension_numbers = #tpu.dot_dimension_numbers<[1], [0], [0], [1], [0, 0, 1, 1], [], []>} : vector<8x8xbf16>, vector<8x16xbf16>, vector<8x16xf32> -> vector<8x16xf32>
      %60 = arith.addf %56, %59 : vector<8x16xf32>
      %c0_31 = arith.constant 0 : index
      %c0_32 = arith.constant 0 : index
      %61 = vector.load %arg12[%c0_31, %c0_32] : memref<8x16xf32, #tpu.memory_space<vmem>>, vector<8x16xf32>
      tpu.vector_store %arg12[%c0_31, %c0_32], %60 {strides = array<i32>} : memref<8x16xf32, #tpu.memory_space<vmem>>, vector<8x16xf32>,
      %c0_33 = arith.constant 0 : index
      %c0_34 = arith.constant 0 : index
      %62 = vector.load %arg10[%c0_33, %c0_34] : memref<8x1xf32, #tpu.memory_space<vmem>>, vector<8x1xf32>
      tpu.vector_store %arg10[%c0_33, %c0_34], %42 {strides = array<i32>} : memref<8x1xf32, #tpu.memory_space<vmem>>, vector<8x1xf32>,
      %c0_35 = arith.constant 0 : index
      %c0_36 = arith.constant 0 : index
      %63 = vector.load %arg11[%c0_35, %c0_36] : memref<8x1xf32, #tpu.memory_space<vmem>>, vector<8x1xf32>
      %64 = tpu.reciprocal %63 {approx = true} : vector<8x1xf32> -> vector<8x1xf32>
      %c0_37 = arith.constant 0 : index
      %c0_38 = arith.constant 0 : index
      %65 = vector.load %arg12[%c0_37, %c0_38] : memref<8x16xf32, #tpu.memory_space<vmem>>, vector<8x16xf32>
      %66 = vector.broadcast %64 : vector<8x1xf32> to vector<8x16xf32>
      %67 = arith.mulf %65, %66 : vector<8x16xf32>
      %c0_39 = arith.constant 0 : index
      %c0_40 = arith.constant 0 : index
      %c0_41 = arith.constant 0 : index
      %68 = vector.load %arg9[%c0_39, %c0_40, %c0_41] : memref<1x8x16xf32, #tpu.memory_space<vmem>>, vector<1x8x16xf32>
      %69 = vector.shape_cast %68 : vector<1x8x16xf32> to vector<8x16xf32>
      %70 = vector.shape_cast %67 : vector<8x16xf32> to vector<1x8x16xf32>
      tpu.vector_store %arg9[%c0_39, %c0_40, %c0_41], %70 {strides = array<i32>} : memref<1x8x16xf32, #tpu.memory_space<vmem>>, vector<1x8x16xf32>,
    } else {
    }
    return
  }
  func.func @transform_0(%arg0: i32, %arg1: i32, %arg2: i32) -> (i32, i32, i32) {
    %c0_i32 = arith.constant 0 : i32
    %c0_i32_0 = arith.constant 0 : i32
    return %arg0, %arg1, %c0_i32 : i32, i32, i32
  }
  func.func @transform_1(%arg0: i32, %arg1: i32, %arg2: i32) -> (i32, i32, i32) {
    %c0_i32 = arith.constant 0 : i32
    %c0_i32_0 = arith.constant 0 : i32
    return %arg0, %arg2, %c0_i32 : i32, i32, i32
  }
  func.func @transform_2(%arg0: i32, %arg1: i32, %arg2: i32) -> (i32, i32) {
    %c0_i32 = arith.constant 0 : i32
    %c0_i32_0 = arith.constant 0 : i32
    %c0_i32_1 = arith.constant 0 : i32
    return %c0_i32, %c0_i32_0 : i32, i32
  }
  func.func @transform_3(%arg0: i32, %arg1: i32, %arg2: i32) -> (i32, i32) {
    %c0_i32 = arith.constant 0 : i32
    %c0_i32_0 = arith.constant 0 : i32
    %c0_i32_1 = arith.constant 0 : i32
    return %c0_i32, %c0_i32_0 : i32, i32
  }
  func.func @transform_4(%arg0: i32, %arg1: i32, %arg2: i32) -> (i32, i32) {
    %c0_i32 = arith.constant 0 : i32
    %c0_i32_0 = arith.constant 0 : i32
    %c0_i32_1 = arith.constant 0 : i32
    return %c0_i32, %c0_i32_0 : i32, i32
  }
  func.func @transform_5(%arg0: i32, %arg1: i32, %arg2: i32) -> (i32, i32) {
    %c0_i32 = arith.constant 0 : i32
    %c0_i32_0 = arith.constant 0 : i32
    %c0_i32_1 = arith.constant 0 : i32
    return %c0_i32, %c0_i32_0 : i32, i32
  }
  func.func @transform_6(%arg0: i32, %arg1: i32, %arg2: i32) -> (i32, i32, i32) {
    %c0_i32 = arith.constant 0 : i32
    %c0_i32_0 = arith.constant 0 : i32
    return %arg0, %arg1, %c0_i32 : i32, i32, i32
  }
}

</mosaic_0001>

<llo_original>
// kernel: tpu_custom_call.1
$region0: #{tpu_custom_call.1}
  #allocation0 [shape = 'u32[]', space=smem, size = 0x4, offset = 0x4, fixed_abs, tag = 'smem constant byte address 0x4 - core index']
  #allocation1 [shape = 'u32[72,128]{1,0:T(1,128)}', space=vmem, size = 0x9000, scoped, tag = 'internal scratch']
  #allocation2 [shape = 'f32[8,1]{1,0:T(8,128)}', space=vmem, size = 0x1000, scoped, tag = 'scratch operand']
  #allocation3 [shape = 'f32[8,1]{1,0:T(8,128)}', space=vmem, size = 0x1000, scoped, tag = 'scratch operand']
  #allocation4 [shape = 'f32[8,16]{1,0:T(8,128)}', space=vmem, size = 0x1000, scoped, tag = 'scratch operand']
  %s0 = inlined_call_operand.vmem [shape: f32[2,8,32], index: 0, kind: input, shape index: {}]
  %s1 = inlined_call_operand.hbm [shape: f32[2,8,32], index: 1, kind: input, shape index: {}]
  %s2 = inlined_call_operand.vmem [shape: f32[32,16], index: 2, kind: input, shape index: {}]
  %s3 = inlined_call_operand.vmem [shape: f32[1,16], index: 3, kind: input, shape index: {}]
  %s4 = inlined_call_operand.vmem [shape: f32[32,32], index: 4, kind: input, shape index: {}]
  %s5 = inlined_call_operand.vmem [shape: f32[1,32], index: 5, kind: input, shape index: {}]
  %s6 = inlined_call_operand.hbm [shape: f32[2,8,16], index: 6, kind: output, shape index: {}]
  %s7 = sld [smem:[#allocation0]]
  $region73: #{tpu_custom_call.1} parent=0
    _
  %s9 = ssub.s32 1, %s7
  %s10 = scalar_select 0, %s9, %s7
  $region1: #{tpu_custom_call.1} parent=0
    #allocation5 [shape = 'u8[8192]{0}', space=vmem, size = 0x2000, scoped, tag = 'input window, operand 1']
    #allocation6 [shape = 's32[2]{0}', space=sflag, size = 0x8, scoped, tag = 'scoped memory for tpu_custom_call.1']
    #allocation7 [shape = 's32[2]{0}', space=sflag, size = 0x8, scoped, tag = 'scoped memory for tpu_custom_call.1']
    #allocation8 [shape = 'u8[8192]{0}', space=vmem, size = 0x2000, scoped, tag = 'output window, operand 0']
    %11 = vsyncpa [#allocation6], 0
    %s12 = scalar_lea.sflag [#allocation6], 1
    %13 = vsyncpa %s12, 0
    %14 = vsyncpa [#allocation7], 0
    %s15 = scalar_lea.sflag [#allocation7], 1
    %16 = vsyncpa %s15, 0
    loop: start=0, step=1, limit=4
    $region2: #{tpu_custom_call.1} parent=1 // loop_pre_header
      _
    $region3: #{tpu_custom_call.1} parent=1 // loop_header
      %s18 = sphi 0, %s22
      %p19 = scmp.ge.s32.totalorder %s18, 4
      %s25 = sphi 0, %s44
      %s26 = sphi 0, %s40
      %s27 = sphi 0, %s36
      %s28 = sphi 0, %s25
      %s29 = sphi 0, %s26
      %s30 = sphi 0, %s27
      %s31 = sphi 0, %s28
      %s32 = sphi 0, %s29
      %s33 = sphi 0, %s30
      %s49 = sphi 0, %s51
      %s52 = sphi 0, %s49
      %s53 = sphi 0, %s52
      %s69 = sphi 0, %s53
      %s77 = sphi 0, %s79
      %s80 = sphi 0, %s77
      %s81 = sphi 0, %s80
      %s97 = sphi 0, %s81
      %s101 = sphi 0, %s101
      %s103 = sphi 0, %s101
      %s104 = sphi 0, %s103
      %s118 = sphi 0, %s104
      %s122 = sphi 0, %s122
      %s124 = sphi 0, %s122
      %s125 = sphi 0, %s124
      %s139 = sphi 0, %s125
      %s143 = sphi 0, %s143
      %s145 = sphi 0, %s143
      %s146 = sphi 0, %s145
      %s160 = sphi 0, %s146
      %s164 = sphi 0, %s164
      %s166 = sphi 0, %s164
      %s167 = sphi 0, %s166
      %s181 = sphi 0, %s167
      %s189 = sphi 0, %s191
      %s192 = sphi 0, %s189
      %s193 = sphi 0, %s192
      %s209 = sphi 0, %s193
    $region4: #{tpu_custom_call.1} parent=1 // loop_header_branch
      %21 = sbr.rel (%p19) target = $region8
    $region5: #{tpu_custom_call.1} parent=1 // loop_body
      %s23 = ssub.s32 %s18, 1
      %s24 = ssub.s32 %s18, 2
      %s34 = sadd.s32 1, %s27
      %p35 = scmp.ge.s32.totalorder %s34, 1
      %s36 = scalar_select %p35, 0, %s34
      %s37 = sadd.s32 1, %s26
      %s38 = scalar_select %p35, %s37, %s26
      %p39 = scmp.ge.s32.totalorder %s38, 1
      %s40 = scalar_select %p39, 0, %s38
      %s41 = sadd.s32 1, %s25
      %s42 = scalar_select %p39, %s41, %s25
      %p43 = scmp.ge.s32.totalorder %s42, 2
      %s44 = scalar_select %p43, 0, %s42
      %s45 = ssub.s32 %s25, %s44
      %s46 = ssub.s32 %s26, %s40
      %s47 = sor.u32 %s45, %s46
      %p48 = scmp.eq.s32.totalorder %s47, 0
      %s50 = sadd.s32 %s49, 1
      %s51 = scalar_select %p48, %s49, %s50
      %p54 = pneg %p48
      %p55 = scmp.eq.s32.totalorder %s18, 1
      %p56 = por %p54, %p55
      %p57 = scmp.ne.s32.totalorder %s49, %s52
      %p58 = scmp.eq.s32.totalorder %s18, 0
      %p59 = por %p57, %p58
      %p60 = scmp.ne.s32.totalorder %s49, %s52
      %p61 = scmp.eq.s32.totalorder %s23, 1
      %p62 = por %p60, %p61
      %p63 = scmp.ne.s32.totalorder %s52, %s53
      %p64 = scmp.eq.s32.totalorder %s23, 0
      %p65 = por %p63, %p64
      %p66 = scmp.ne.s32.totalorder %s52, %s53
      %p67 = scmp.eq.s32.totalorder %s24, 1
      %p68 = por %p66, %p67
      %p70 = scmp.ne.s32.totalorder %s53, %s69
      %p71 = scmp.eq.s32.totalorder %s24, 0
      %p72 = por %p70, %p71
      %s73 = ssub.s32 %s25, %s44
      %s74 = ssub.s32 %s27, %s36
      %s75 = sor.u32 %s73, %s74
      %p76 = scmp.eq.s32.totalorder %s75, 0
      %s78 = sadd.s32 %s77, 1
      %s79 = scalar_select %p76, %s77, %s78
      %p82 = pneg %p76
      %p83 = scmp.eq.s32.totalorder %s18, 1
      %p84 = por %p82, %p83
      %p85 = scmp.ne.s32.totalorder %s77, %s80
      %p86 = scmp.eq.s32.totalorder %s18, 0
      %p87 = por %p85, %p86
      %p88 = scmp.ne.s32.totalorder %s77, %s80
      %p89 = scmp.eq.s32.totalorder %s23, 1
      %p90 = por %p88, %p89
      %p91 = scmp.ne.s32.totalorder %s80, %s81
      %p92 = scmp.eq.s32.totalorder %s23, 0
      %p93 = por %p91, %p92
      %p94 = scmp.ne.s32.totalorder %s80, %s81
      %p95 = scmp.eq.s32.totalorder %s24, 1
      %p96 = por %p94, %p95
      %p98 = scmp.ne.s32.totalorder %s81, %s97
      %p99 = scmp.eq.s32.totalorder %s24, 0
      %p100 = por %p98, %p99
      %s102 = sadd.s32 %s101, 1
      %p105 = scmp.eq.s32.totalorder %s18, 1
      %p106 = scmp.ne.s32.totalorder %s101, %s103
      %p107 = scmp.eq.s32.totalorder %s18, 0
      %p108 = por %p106, %p107
      %p109 = scmp.ne.s32.totalorder %s101, %s103
      %p110 = scmp.eq.s32.totalorder %s23, 1
      %p111 = por %p109, %p110
      %p112 = scmp.ne.s32.totalorder %s103, %s104
      %p113 = scmp.eq.s32.totalorder %s23, 0
      %p114 = por %p112, %p113
      %p115 = scmp.ne.s32.totalorder %s103, %s104
      %p116 = scmp.eq.s32.totalorder %s24, 1
      %p117 = por %p115, %p116
      %p119 = scmp.ne.s32.totalorder %s104, %s118
      %p120 = scmp.eq.s32.totalorder %s24, 0
      %p121 = por %p119, %p120
      %s123 = sadd.s32 %s122, 1
      %p126 = scmp.eq.s32.totalorder %s18, 1
      %p127 = scmp.ne.s32.totalorder %s122, %s124
      %p128 = scmp.eq.s32.totalorder %s18, 0
      %p129 = por %p127, %p128
      %p130 = scmp.ne.s32.totalorder %s122, %s124
      %p131 = scmp.eq.s32.totalorder %s23, 1
      %p132 = por %p130, %p131
      %p133 = scmp.ne.s32.totalorder %s124, %s125
      %p134 = scmp.eq.s32.totalorder %s23, 0
      %p135 = por %p133, %p134
      %p136 = scmp.ne.s32.totalorder %s124, %s125
      %p137 = scmp.eq.s32.totalorder %s24, 1
      %p138 = por %p136, %p137
      %p140 = scmp.ne.s32.totalorder %s125, %s139
      %p141 = scmp.eq.s32.totalorder %s24, 0
      %p142 = por %p140, %p141
      %s144 = sadd.s32 %s143, 1
      %p147 = scmp.eq.s32.totalorder %s18, 1
      %p148 = scmp.ne.s32.totalorder %s143, %s145
      %p149 = scmp.eq.s32.totalorder %s18, 0
      %p150 = por %p148, %p149
      %p151 = scmp.ne.s32.totalorder %s143, %s145
      %p152 = scmp.eq.s32.totalorder %s23, 1
      %p153 = por %p151, %p152
      %p154 = scmp.ne.s32.totalorder %s145, %s146
      %p155 = scmp.eq.s32.totalorder %s23, 0
      %p156 = por %p154, %p155
      %p157 = scmp.ne.s32.totalorder %s145, %s146
      %p158 = scmp.eq.s32.totalorder %s24, 1
      %p159 = por %p157, %p158
      %p161 = scmp.ne.s32.totalorder %s146, %s160
      %p162 = scmp.eq.s32.totalorder %s24, 0
      %p163 = por %p161, %p162
      %s165 = sadd.s32 %s164, 1
      %p168 = scmp.eq.s32.totalorder %s18, 1
      %p169 = scmp.ne.s32.totalorder %s164, %s166
      %p170 = scmp.eq.s32.totalorder %s18, 0
      %p171 = por %p169, %p170
      %p172 = scmp.ne.s32.totalorder %s164, %s166
      %p173 = scmp.eq.s32.totalorder %s23, 1
      %p174 = por %p172, %p173
      %p175 = scmp.ne.s32.totalorder %s166, %s167
      %p176 = scmp.eq.s32.totalorder %s23, 0
      %p177 = por %p175, %p176
      %p178 = scmp.ne.s32.totalorder %s166, %s167
      %p179 = scmp.eq.s32.totalorder %s24, 1
      %p180 = por %p178, %p179
      %p182 = scmp.ne.s32.totalorder %s167, %s181
      %p183 = scmp.eq.s32.totalorder %s24, 0
      %p184 = por %p182, %p183
      %s185 = ssub.s32 %s25, %s44
      %s186 = ssub.s32 %s26, %s40
      %s187 = sor.u32 %s185, %s186
      %p188 = scmp.eq.s32.totalorder %s187, 0
      %s190 = sadd.s32 %s189, 1
      %s191 = scalar_select %p188, %s189, %s190
      %p194 = pneg %p188
      %p195 = scmp.eq.s32.totalorder %s18, 1
      %p196 = por %p194, %p195
      %p197 = scmp.ne.s32.totalorder %s189, %s192
      %p198 = scmp.eq.s32.totalorder %s18, 0
      %p199 = por %p197, %p198
      %p200 = scmp.ne.s32.totalorder %s189, %s192
      %p201 = scmp.eq.s32.totalorder %s23, 1
      %p202 = por %p200, %p201
      %p203 = scmp.ne.s32.totalorder %s192, %s193
      %p204 = scmp.eq.s32.totalorder %s23, 0
      %p205 = por %p203, %p204
      %p206 = scmp.ne.s32.totalorder %s192, %s193
      %p207 = scmp.eq.s32.totalorder %s24, 1
      %p208 = por %p206, %p207
      %p210 = scmp.ne.s32.totalorder %s193, %s209
      %p211 = scmp.eq.s32.totalorder %s24, 0
      %p212 = por %p210, %p211
      %p213 = scmp.le.s32.totalorder 1, %s18
      %p214 = scmp.lt.s32.totalorder %s18, 3
      %p215 = pnand %p213, %p214
      %p216 = pneg %p215
      // Predicated region
      $region9: #{tpu_custom_call.1} parent=5 // pred_check
        _
      $region10: #{tpu_custom_call.1} parent=5 // pred_check_branch
        %218 = sbr.rel (%p215) target = $region12
      $region11: #{tpu_custom_call.1} parent=5 // pred_region
        %s219 = ssub.s32 %s18, 1
        // Predicated region
        $region13: #{tpu_custom_call.1} parent=11 // pred_check
          %p220 = pneg %p114
        $region14: #{tpu_custom_call.1} parent=11 // pred_check_branch
          %222 = sbr.rel (%p220) target = $region16
        $region15: #{tpu_custom_call.1} parent=11 // pred_region
          _
        $region16: #{tpu_custom_call.1} parent=11 // pred_fallthru
          _
        // Predicated region
        $region17: #{tpu_custom_call.1} parent=11 // pred_check
          %p223 = pneg %p135
        $region18: #{tpu_custom_call.1} parent=11 // pred_check_branch
          %225 = sbr.rel (%p223) target = $region20
        $region19: #{tpu_custom_call.1} parent=11 // pred_region
          _
        $region20: #{tpu_custom_call.1} parent=11 // pred_fallthru
          _
        // Predicated region
        $region21: #{tpu_custom_call.1} parent=11 // pred_check
          %p226 = pneg %p156
        $region22: #{tpu_custom_call.1} parent=11 // pred_check_branch
          %228 = sbr.rel (%p226) target = $region24
        $region23: #{tpu_custom_call.1} parent=11 // pred_region
          _
        $region24: #{tpu_custom_call.1} parent=11 // pred_fallthru
          _
        // Predicated region
        $region25: #{tpu_custom_call.1} parent=11 // pred_check
          %p229 = pneg %p177
        $region26: #{tpu_custom_call.1} parent=11 // pred_check_branch
          %231 = sbr.rel (%p229) target = $region28
        $region27: #{tpu_custom_call.1} parent=11 // pred_region
          _
        $region28: #{tpu_custom_call.1} parent=11 // pred_fallthru
          _
      $region12: #{tpu_custom_call.1} parent=5 // pred_fallthru
        _
      %p232 = scmp.lt.s32.totalorder %s18, 2
      // Predicated region
      $region29: #{tpu_custom_call.1} parent=5 // pred_check
        %p233 = pneg %p232
      $region30: #{tpu_custom_call.1} parent=5 // pred_check_branch
        %235 = sbr.rel (%p233) target = $region32
      $region31: #{tpu_custom_call.1} parent=5 // pred_region
        // Predicated region
        $region33: #{tpu_custom_call.1} parent=31 // pred_check
          %p236 = pneg %p59
        $region34: #{tpu_custom_call.1} parent=31 // pred_check_branch
          %238 = sbr.rel (%p236) target = $region36
        $region35: #{tpu_custom_call.1} parent=31 // pred_region
          %p239 = scmp.lt.s32.totalorder %s25, 1
          %s240 = scalar_select %p239, %s25, 1
          %p241 = scmp.lt.s32.totalorder %s26, 0
          %s242 = scalar_select %p241, %s26, 0
          %s243 = sadd.s32 %s242, %s240
          %s244 = smul.addr %s243, 8
          %s245 = scalar_lea.vmem %s0, %s244
        $region36: #{tpu_custom_call.1} parent=31 // pred_fallthru
          _
        // Predicated region
        $region37: #{tpu_custom_call.1} parent=31 // pred_check
          %p246 = pneg %p87
        $region38: #{tpu_custom_call.1} parent=31 // pred_check_branch
          %248 = sbr.rel (%p246) target = $region40
        $region39: #{tpu_custom_call.1} parent=31 // pred_region
          %s249 = sand.u32 %s77, 1
          %s250 = scalar_lea.sflag [#allocation6], %s249
          %s251 = sand.u32 %s77, 1
          %s252 = smul.addr %s251, 8
          %s253 = scalar_lea.vmem [#allocation5], %s252
          %255 = vsyncadd %s250, 0
          %s256 = sadd.s32 %s27, %s25
          %s257 = smul.addr %s256, 8
          %s258 = scalar_lea.hbm %s1, %s257
          %s260 = sshll.u32 %s258, 4
          %s261 = int_to_ptr.hbm [resolvable:$true] %s260
          %s262 = sshll.u32 %s253, 4
          %s263 = int_to_ptr.vmem [resolvable:$true] %s262
          %265 = dma.hbm_to_vmem [thread:$0]  %s261, 128, %s263, %s250
        $region40: #{tpu_custom_call.1} parent=31 // pred_fallthru
          _
      $region32: #{tpu_custom_call.1} parent=5 // pred_fallthru
        _
      %p266 = scmp.le.s32.totalorder 1, %s18
      %p267 = scmp.lt.s32.totalorder %s18, 3
      %p268 = pnand %p266, %p267
      %p269 = pneg %p268
      // Predicated region
      $region41: #{tpu_custom_call.1} parent=5 // pred_check
        _
      $region42: #{tpu_custom_call.1} parent=5 // pred_check_branch
        %271 = sbr.rel (%p268) target = $region44
      $region43: #{tpu_custom_call.1} parent=5 // pred_region
        %s272 = ssub.s32 %s18, 1
        %s273 = sand.u32 %s80, 1
        %s274 = scalar_lea.sflag [#allocation6], %s273
        %s275 = sand.u32 %s80, 1
        %s276 = smul.addr %s275, 8
        %s277 = scalar_lea.vmem [#allocation5], %s276
        // Predicated region
        $region45: #{tpu_custom_call.1} parent=43 // pred_check
          %p278 = pneg %p93
        $region46: #{tpu_custom_call.1} parent=43 // pred_check_branch
          %280 = sbr.rel (%p278) target = $region48
        $region47: #{tpu_custom_call.1} parent=43 // pred_region
          %282 = dma.done %s274, 128
        $region48: #{tpu_custom_call.1} parent=43 // pred_fallthru
          _
        %p283 = scmp.lt.s32.totalorder %s28, 1
        %s284 = scalar_select %p283, %s28, 1
        %p285 = scmp.lt.s32.totalorder %s29, 0
        %s286 = scalar_select %p285, %s29, 0
        %s287 = sadd.s32 %s286, %s284
        %s288 = smul.addr %s287, 8
        %s289 = scalar_lea.vmem %s0, %s288
        %p290 = pneg %p65
        %p291 = pneg %p62
        %s292 = sand.u32 %s80, 1
        %s293 = scalar_lea.sflag [#allocation6], %s292
        %s294 = sand.u32 %s80, 1
        %s295 = smul.addr %s294, 8
        %s296 = scalar_lea.vmem [#allocation5], %s295
        %p297 = pneg %p93
        %p298 = pneg %p90
        %p299 = pneg %p114
        %p300 = pneg %p111
        %p301 = pneg %p135
        %p302 = pneg %p132
        %p303 = pneg %p156
        %p304 = pneg %p153
        %p305 = pneg %p177
        %p306 = pneg %p174
        %p307 = pneg %p205
        %p308 = pneg %p202
        %s309 = sand.u32 %s192, 1
        %s310 = scalar_lea.sflag [#allocation7], %s309
        %s311 = sand.u32 %s192, 1
        %s312 = smul.addr %s311, 8
        %s313 = scalar_lea.vmem [#allocation8], %s312
        %p314 = scmp.lt.s32.totalorder %s28, 1
        %s315 = scalar_select %p314, %s28, 1
        %p316 = scmp.lt.s32.totalorder %s29, 0
        %s317 = scalar_select %p316, %s29, 0
        %s318 = sadd.s32 %s317, %s315
        %s319 = smul.addr %s318, 8
        %s320 = scalar_lea.vmem %s0, %s319
        %p322 = scmp.eq.s32.totalorder %s30, 0
        // Predicated region
        $region49: #{tpu_custom_call.1} parent=43 // pred_check
          %p323 = pneg %p322
        $region50: #{tpu_custom_call.1} parent=43 // pred_check_branch
          %325 = sbr.rel (%p323) target = $region52
        $region51: #{tpu_custom_call.1} parent=43 // pred_region
          %vm326 = vcmask 7168
          %327 = vst.msk [vmem:[#allocation2] sm:$0xff] %vm326, -inf
          %328 = vst.msk [vmem:[#allocation3] sm:$0xff] %vm326, 0.0
          %vm329 = vcmask 130048
          %330 = vst.msk [vmem:[#allocation4] sm:$0xff] %vm329, 0.0
        $region52: #{tpu_custom_call.1} parent=43 // pred_fallthru
          _
        %p331 = scmp.lt.s32.totalorder %s30, %s29
        // Predicated region
        $region53: #{tpu_custom_call.1} parent=43 // pred_check
          %p332 = pneg %p331
        $region54: #{tpu_custom_call.1} parent=43 // pred_check_branch
          %334 = sbr.rel (%p332) target = $region56
        $region55: #{tpu_custom_call.1} parent=43 // pred_region
          %v335 = vld [vmem:[%s320] sm:$0xff]
          %v336 = vpack.c.bf16 %v335, %v335
          %v337 = vld [vmem:[%s277] sm:$0xff]
          %v338 = vpack.c.bf16 %v337, %v337
          %v339 = vld [vmem:[%s2] sm:$0xff]
          %v340 = vld [vmem:[%s2 + $0x8] sm:$0xff]
          %v341 = vld [vmem:[%s2 + $0x10] sm:$0xff]
          %v342 = vld [vmem:[%s2 + $0x18] sm:$0xff]
          %v343 = vpack.c.bf16 %v340, %v339
          %v344 = vpack.c.bf16 %v342, %v341
          %v345 = vld [vmem:[%s4] sm:$0xff]
          %v346 = vld [vmem:[%s4 + $0x8] sm:$0xff]
          %v347 = vld [vmem:[%s4 + $0x10] sm:$0xff]
          %v348 = vld [vmem:[%s4 + $0x18] sm:$0xff]
          %v349 = vpack.c.bf16 %v346, %v345
          %v350 = vpack.c.bf16 %v348, %v347
          %v351 = vld [vmem:[%s3] sm:$0x1]
          %v353 = vperm.slane %v351, 0
          %vm355 = vcmask 261120
          %v357 = vsel %vm355, %v336, 0
          %359 = vmatpush.bf16.msra.mxu0 0
          %360 = vmatpush.bf16.msra.mxu0 0
          %361 = vmatpush.bf16.msra.mxu0 0
          %362 = vmatpush.bf16.msra.mxu0 0
          %363 = vmatpush.bf16.msra.mxu0 0
          %364 = vmatpush.bf16.msra.mxu0 0
          %365 = vmatpush.bf16.msra.mxu0 %v344
          %366 = vmatpush.bf16.msra.mxu0 %v343
          %367 = vmatmul.bf16.gmra.mxu0 %v357
          %v368 = vpop.f32.mrf.mxu0
          %v369 = vadd.f32 %v353, %v368
          %v370 = vpop.f32.mrf.mxu0
          %371 = vdwg.mxu0
          %v372 = vld [vmem:[%s5] sm:$0x1]
          %v374 = vperm.slane %v372, 0
          %v377 = vsel %vm355, %v338, 0
          %379 = vmatpush.bf16.msra.mxu0 0
          %380 = vmatpush.bf16.msra.mxu0 0
          %381 = vmatpush.bf16.msra.mxu0 0
          %382 = vmatpush.bf16.msra.mxu0 0
          %383 = vmatpush.bf16.msra.mxu0 0
          %384 = vmatpush.bf16.msra.mxu0 0
          %385 = vmatpush.bf16.msra.mxu0 %v350
          %386 = vmatpush.bf16.msra.mxu0 %v349
          %387 = vmatmul.bf16.gmra.mxu0 %v377
          %v388 = vpop.f32.mrf.mxu0
          %v389 = vadd.f32 %v374, %v388
          %v390 = vpop.f32.mrf.mxu0
          %391 = vdwg.mxu0
          %v392 = vmul.f32 %v369, 0.25
          %v393 = vpack.c.bf16 %v392, %v392
          %v394 = vpack.c.bf16 %v389, %v389
          %vm395 = vcmask 130048
          %v397 = vsel %vm395, %v393, 0
          %v400 = vsel %vm395, %v394, 0
          %402 = vmatpush.bf16.xpose.msra.mxu0 0
          %403 = vmatpush.bf16.xpose.msra.mxu0 0
          %404 = vmatpush.bf16.xpose.msra.mxu0 0
          %405 = vmatpush.bf16.xpose.msra.mxu0 0
          %406 = vmatpush.bf16.xpose.msra.mxu0 0
          %407 = vmatpush.bf16.xpose.msra.mxu0 0
          %408 = vmatpush.bf16.xpose.msra.mxu0 0
          %409 = vmatpush.bf16.xpose.msra.mxu0 %v400
          %410 = vmatmul.bf16.gmra.mxu0 %v397
          %v411 = vpop.f32.mrf.mxu0
          %v412 = vadd.f32 0.0, %v411
          %v413 = vpop.f32.mrf.mxu0
          %414 = vdwg.mxu0
          %v415 = vld [vmem:[#allocation2] sm:$0xff]
          %vm416 = vcmask 64512
          %v417 = vsel %vm416, %v412, -inf
          %418 = vmax.xlane.f32.xlu0 %v417
          %v419 = vpop.xlane.xlu0 %418
          %v420 = vmax.f32 %v415, %v419
          %v421 = vsub.f32 %v415, %v420
          %v422 = vmul.f32 %v421, 1.442695
          %v423 = vpow.pop %v422
          %425 = vset.pattern.permute.xlu0 0
          %426 = vperm.xlu0 %425, %v420
          %v427 = vpop.permute.xlu0 %426
          %v429 = vsub.f32 %v412, %v427
          %v430 = vmul.f32 %v429, 1.442695
          %v431 = vpow.pop %v430
          %v432 = vld [vmem:[#allocation3] sm:$0xff]
          %v433 = vmul.f32 %v423, %v432
          %v434 = vsel %vm416, %v431, 0.0
          %435 = vadd.xlane.f32.xlu0 %v434
          %v436 = vpop.xlane.xlu0 %435
          %v437 = vadd.f32 %v433, %v436
          %vm438 = vcmask 7168
          %439 = vst.msk [vmem:[#allocation3] sm:$0xff] %vm438, %v437
          %v440 = vld [vmem:[#allocation4] sm:$0xff]
          %442 = vset.pattern.permute.xlu0 0
          %443 = vperm.xlu0 %442, %v423
          %v444 = vpop.permute.xlu0 %443
          %v446 = vmul.f32 %v444, %v440
          %v447 = vpack.c.bf16 %v431, %v431
          %449 = vrot.lane.b32.xlu0 %v394, 112
          %v450 = vpop.permute.xlu0 %449
          %v452 = vsel %vm416, %v447, 0
          %vm454 = vcmask 1043456
          %v456 = vsel %vm454, %v450, 0
          %458 = vmatpush.bf16.msra.mxu0 0
          %459 = vmatpush.bf16.msra.mxu0 0
          %460 = vmatpush.bf16.msra.mxu0 0
          %461 = vmatpush.bf16.msra.mxu0 0
          %462 = vmatpush.bf16.msra.mxu0 0
          %463 = vmatpush.bf16.msra.mxu0 0
          %464 = vmatpush.bf16.msra.mxu0 0
          %465 = vmatpush.bf16.msra.mxu0 %v456
          %466 = vmatmul.bf16.gmra.mxu0 %v452
          %v467 = vpop.f32.mrf.mxu0
          %v468 = vadd.f32 0.0, %v467
          %v469 = vpop.f32.mrf.mxu0
          %470 = vdwg.mxu0
          %v471 = vadd.f32 %v446, %v468
          %472 = vst.msk [vmem:[#allocation4] sm:$0xff] %vm395, %v471
          %473 = vst.msk [vmem:[#allocation2] sm:$0xff] %vm438, %v420
        $region56: #{tpu_custom_call.1} parent=43 // pred_fallthru
          _
        %p474 = scmp.eq.s32.totalorder %s30, %s29
        // Predicated region
        $region57: #{tpu_custom_call.1} parent=43 // pred_check
          %p475 = pneg %p474
        $region58: #{tpu_custom_call.1} parent=43 // pred_check_branch
          %477 = sbr.rel (%p475) target = $region60
        $region59: #{tpu_custom_call.1} parent=43 // pred_region
          %v478 = vld [vmem:[%s320] sm:$0xff]
          %v479 = vpack.c.bf16 %v478, %v478
          %v480 = vld [vmem:[%s277] sm:$0xff]
          %v481 = vpack.c.bf16 %v480, %v480
          %v482 = vld [vmem:[%s2] sm:$0xff]
          %v483 = vld [vmem:[%s2 + $0x8] sm:$0xff]
          %v484 = vld [vmem:[%s2 + $0x10] sm:$0xff]
          %v485 = vld [vmem:[%s2 + $0x18] sm:$0xff]
          %v486 = vpack.c.bf16 %v483, %v482
          %v487 = vpack.c.bf16 %v485, %v484
          %v488 = vld [vmem:[%s4] sm:$0xff]
          %v489 = vld [vmem:[%s4 + $0x8] sm:$0xff]
          %v490 = vld [vmem:[%s4 + $0x10] sm:$0xff]
          %v491 = vld [vmem:[%s4 + $0x18] sm:$0xff]
          %v492 = vpack.c.bf16 %v489, %v488
          %v493 = vpack.c.bf16 %v491, %v490
          %v494 = vld [vmem:[%s3] sm:$0x1]
          %v496 = vperm.slane %v494, 0
          %vm498 = vcmask 261120
          %v500 = vsel %vm498, %v479, 0
          %502 = vmatpush.bf16.msra.mxu0 0
          %503 = vmatpush.bf16.msra.mxu0 0
          %504 = vmatpush.bf16.msra.mxu0 0
          %505 = vmatpush.bf16.msra.mxu0 0
          %506 = vmatpush.bf16.msra.mxu0 0
          %507 = vmatpush.bf16.msra.mxu0 0
          %508 = vmatpush.bf16.msra.mxu0 %v487
          %509 = vmatpush.bf16.msra.mxu0 %v486
          %510 = vmatmul.bf16.gmra.mxu0 %v500
          %v511 = vpop.f32.mrf.mxu0
          %v512 = vadd.f32 %v496, %v511
          %v513 = vpop.f32.mrf.mxu0
          %514 = vdwg.mxu0
          %v515 = vld [vmem:[%s5] sm:$0x1]
          %v517 = vperm.slane %v515, 0
          %v520 = vsel %vm498, %v481, 0
          %522 = vmatpush.bf16.msra.mxu0 0
          %523 = vmatpush.bf16.msra.mxu0 0
          %524 = vmatpush.bf16.msra.mxu0 0
          %525 = vmatpush.bf16.msra.mxu0 0
          %526 = vmatpush.bf16.msra.mxu0 0
          %527 = vmatpush.bf16.msra.mxu0 0
          %528 = vmatpush.bf16.msra.mxu0 %v493
          %529 = vmatpush.bf16.msra.mxu0 %v492
          %530 = vmatmul.bf16.gmra.mxu0 %v520
          %v531 = vpop.f32.mrf.mxu0
          %v532 = vadd.f32 %v517, %v531
          %v533 = vpop.f32.mrf.mxu0
          %534 = vdwg.mxu0
          %v535 = vmul.f32 %v512, 0.25
          %v536 = vpack.c.bf16 %v535, %v535
          %v537 = vpack.c.bf16 %v532, %v532
          %vm538 = vcmask 130048
          %v540 = vsel %vm538, %v536, 0
          %v543 = vsel %vm538, %v537, 0
          %545 = vmatpush.bf16.xpose.msra.mxu0 0
          %546 = vmatpush.bf16.xpose.msra.mxu0 0
          %547 = vmatpush.bf16.xpose.msra.mxu0 0
          %548 = vmatpush.bf16.xpose.msra.mxu0 0
          %549 = vmatpush.bf16.xpose.msra.mxu0 0
          %550 = vmatpush.bf16.xpose.msra.mxu0 0
          %551 = vmatpush.bf16.xpose.msra.mxu0 0
          %552 = vmatpush.bf16.xpose.msra.mxu0 %v543
          %553 = vmatmul.bf16.gmra.mxu0 %v540
          %v554 = vpop.f32.mrf.mxu0
          %v555 = vadd.f32 0.0, %v554
          %v556 = vpop.f32.mrf.mxu0
          %557 = vdwg.mxu0
          %v558 = vlaneseq
          %v559 = vshrl.u32 %v558, 7
          %v560 = vlaneseq
          %v561 = vand.u32 %v560, 127
          %vm562 = vcmp.le.s32.totalorder %v561, %v559
          %v563 = vsel %vm562, %v555, -inf
          %v564 = vld [vmem:[#allocation2] sm:$0xff]
          %vm565 = vcmask 64512
          %v566 = vsel %vm565, %v563, -inf
          %567 = vmax.xlane.f32.xlu0 %v566
          %v568 = vpop.xlane.xlu0 %567
          %v569 = vmax.f32 %v564, %v568
          %v570 = vsub.f32 %v564, %v569
          %v571 = vmul.f32 %v570, 1.442695
          %v572 = vpow.pop %v571
          %574 = vset.pattern.permute.xlu0 0
          %575 = vperm.xlu0 %574, %v569
          %v576 = vpop.permute.xlu0 %575
          %v578 = vsub.f32 %v563, %v576
          %v579 = vmul.f32 %v578, 1.442695
          %v580 = vpow.pop %v579
          %v581 = vld [vmem:[#allocation3] sm:$0xff]
          %v582 = vmul.f32 %v572, %v581
          %v583 = vsel %vm565, %v580, 0.0
          %584 = vadd.xlane.f32.xlu0 %v583
          %v585 = vpop.xlane.xlu0 %584
          %v586 = vadd.f32 %v582, %v585
          %vm587 = vcmask 7168
          %588 = vst.msk [vmem:[#allocation3] sm:$0xff] %vm587, %v586
          %v589 = vld [vmem:[#allocation4] sm:$0xff]
          %591 = vset.pattern.permute.xlu0 0
          %592 = vperm.xlu0 %591, %v572
          %v593 = vpop.permute.xlu0 %592
          %v595 = vmul.f32 %v593, %v589
          %v596 = vpack.c.bf16 %v580, %v580
          %598 = vrot.lane.b32.xlu0 %v537, 112
          %v599 = vpop.permute.xlu0 %598
          %v601 = vsel %vm565, %v596, 0
          %vm603 = vcmask 1043456
          %v605 = vsel %vm603, %v599, 0
          %607 = vmatpush.bf16.msra.mxu0 0
          %608 = vmatpush.bf16.msra.mxu0 0
          %609 = vmatpush.bf16.msra.mxu0 0
          %610 = vmatpush.bf16.msra.mxu0 0
          %611 = vmatpush.bf16.msra.mxu0 0
          %612 = vmatpush.bf16.msra.mxu0 0
          %613 = vmatpush.bf16.msra.mxu0 0
          %614 = vmatpush.bf16.msra.mxu0 %v605
          %615 = vmatmul.bf16.gmra.mxu0 %v601
          %v616 = vpop.f32.mrf.mxu0
          %v617 = vadd.f32 0.0, %v616
          %v618 = vpop.f32.mrf.mxu0
          %619 = vdwg.mxu0
          %v620 = vadd.f32 %v595, %v617
          %621 = vst.msk [vmem:[#allocation4] sm:$0xff] %vm538, %v620
          %622 = vst.msk [vmem:[#allocation2] sm:$0xff] %vm587, %v569
          %v623 = vld [vmem:[#allocation3] sm:$0xff]
          %v624 = vrcp.pop %v623
          %v625 = vld [vmem:[#allocation4] sm:$0xff]
          %627 = vset.pattern.permute.xlu0 0
          %628 = vperm.xlu0 %627, %v624
          %v629 = vpop.permute.xlu0 %628
          %v631 = vmul.f32 %v625, %v629
          %632 = vst.msk [vmem:[%s313] sm:$0xff] %vm538, %v631
        $region60: #{tpu_custom_call.1} parent=43 // pred_fallthru
          _
        %s633 = sand.u32 %s192, 1
        %s634 = scalar_lea.sflag [#allocation7], %s633
        %s635 = sand.u32 %s192, 1
        %s636 = smul.addr %s635, 8
        %s637 = scalar_lea.vmem [#allocation8], %s636
        // Predicated region
        $region61: #{tpu_custom_call.1} parent=43 // pred_check
          %p638 = pneg %p202
        $region62: #{tpu_custom_call.1} parent=43 // pred_check_branch
          %640 = sbr.rel (%p638) target = $region64
        $region63: #{tpu_custom_call.1} parent=43 // pred_region
          %642 = vsyncadd %s634, 0
          %s643 = sadd.s32 %s29, %s28
          %s644 = smul.addr %s643, 8
          %s645 = scalar_lea.hbm %s6, %s644
          %s647 = sshll.u32 %s637, 4
          %s648 = int_to_ptr.vmem [resolvable:$true] %s647
          %s649 = sshll.u32 %s645, 4
          %s650 = int_to_ptr.hbm [resolvable:$true] %s649
          %652 = dma.vmem_to_hbm [thread:$0]  %s648, 128, %s650, %s634
        $region64: #{tpu_custom_call.1} parent=43 // pred_fallthru
          _
      $region44: #{tpu_custom_call.1} parent=5 // pred_fallthru
        _
      %p653 = scmp.le.s32.totalorder 2, %s18
      // Predicated region
      $region65: #{tpu_custom_call.1} parent=5 // pred_check
        %p654 = pneg %p653
      $region66: #{tpu_custom_call.1} parent=5 // pred_check_branch
        %656 = sbr.rel (%p654) target = $region68
      $region67: #{tpu_custom_call.1} parent=5 // pred_region
        %s657 = ssub.s32 %s18, 2
        // Predicated region
        $region69: #{tpu_custom_call.1} parent=67 // pred_check
          %p658 = pneg %p208
        $region70: #{tpu_custom_call.1} parent=67 // pred_check_branch
          %660 = sbr.rel (%p658) target = $region72
        $region71: #{tpu_custom_call.1} parent=67 // pred_region
          %s661 = sand.u32 %s193, 1
          %s662 = scalar_lea.sflag [#allocation7], %s661
          %s663 = sand.u32 %s193, 1
          %s664 = smul.addr %s663, 8
          %s665 = scalar_lea.vmem [#allocation8], %s664
          %667 = dma.done %s662, 128
        $region72: #{tpu_custom_call.1} parent=67 // pred_fallthru
          _
      $region68: #{tpu_custom_call.1} parent=5 // pred_fallthru
        _
    $region6: #{tpu_custom_call.1} parent=1 // loop_footer
      %s22 = sadd.s32 1, %s18
    $region7: #{tpu_custom_call.1} parent=1 // loop_footer_branch
      %17 = sbr.rel target = $region3
    $region8: #{tpu_custom_call.1} parent=1 // loop_exit
      _
    %668 = vsyncpa [#allocation6], 1
    %s669 = scalar_lea.sflag [#allocation6], 1
    %670 = vsyncpa %s669, 1
    %671 = vsyncpa [#allocation7], 1
    %s672 = scalar_lea.sflag [#allocation7], 1
    %673 = vsyncpa %s672, 1

</llo_original>
